<compile_context>
chip_gen: v7x
topology: tpu7x:2x2x1
jax: 0.10.0
libtpu: 0.0.40
codegen_flags: <defaults>
</compile_context>

<pallas_src>
import functools

import jax
import jax.numpy as jnp
from jax.experimental import pallas as pl
from jax.experimental.pallas import tpu as pltpu


def _round_up(x, m):
    return ((x + m - 1) // m) * m


def _cw_partial_kernel(logits_ref, target_ref, out_ref, *, batch, tile_b):
    # logits_ref: (C, TB)  class-major, batch on the 128-lane axis.
    # target_ref: (1, TB)  int32, lane-dense.
    # out_ref:    (1, 128) f32, this tile's partial sum in lane 0.
    logits = logits_ref[...].astype(jnp.float32)                # (C, TB)
    target = target_ref[...]                                    # (1, TB)
    C, TB = logits.shape

    # (C, 1) iota broadcast against the (1, TB) target row -> (C, TB) predicate.
    class_ids = jax.lax.broadcasted_iota(jnp.int32, (C, 1), 0)
    eq = class_ids == target                                    # (C, TB) bool

    # real  = logit of the true class
    # other = max logit over the non-true classes (true class -> -1e4 sentinel)
    real = jnp.sum(jnp.where(eq, logits, 0.0), axis=0, keepdims=True)        # (1, TB)
    other = jnp.max(jnp.where(eq, -10000.0, logits), axis=0, keepdims=True)  # (1, TB)

    per_example = jnp.maximum(real - other + 50.0, 0.0)         # (1, TB)

    # Mask the ragged tail (columns beyond the true batch are garbage reads).
    col = pl.program_id(0) * tile_b + jax.lax.broadcasted_iota(jnp.int32, (1, TB), 1)
    per_example = jnp.where(col < batch, per_example, 0.0)

    partial = jnp.sum(per_example)                               # scalar f32
    lane = jax.lax.broadcasted_iota(jnp.int32, (1, 128), 1)
    out_ref[...] = jnp.where(lane == 0, partial, 0.0)            # lane-dense store


def cw_loss(logits, target, num_classes=10, tile_b=131072):
    """logits: (B, num_classes) float, target: (B,) int -> scalar float32."""
    B, C = logits.shape
    assert C == num_classes

    # Class-major / lane-dense layout (wrapper-side layout plumbing).
    # TODO(synk): best case the producer emits class-major (C, B) logits so this
    # transpose (one extra HBM pass over the logits) disappears entirely.
    logits_cm = logits.T                                         # (C, B)
    target_row = target.astype(jnp.int32).reshape(1, B)          # (1, B)

    # Batch tile: multiple of 128 lanes, as large as the (rounded-up) batch but
    # capped so double-buffered VMEM stays ~12 MiB (safe on v5e/v6e/v7x).
    TB = max(128, min(_round_up(tile_b, 128), _round_up(B, 128)))
    num_tiles = pl.cdiv(B, TB)

    kernel = functools.partial(_cw_partial_kernel, batch=B, tile_b=TB)
    partials = pl.pallas_call(
        kernel,
        out_shape=jax.ShapeDtypeStruct((1, num_tiles * 128), jnp.float32),
        grid=(num_tiles,),
        in_specs=[
            pl.BlockSpec((C, TB), lambda i: (0, i)),             # logits tile
            pl.BlockSpec((1, TB), lambda i: (0, i)),             # target tile
        ],
        out_specs=pl.BlockSpec((1, 128), lambda i: (0, i)),      # per-tile partial
        compiler_params=pltpu.CompilerParams(
            dimension_semantics=("parallel",),                   # 2-TC sharding on v7x
            vmem_limit_bytes=32 << 20,
        ),
    )(logits_cm, target_row)

    return -jnp.sum(partials)


def cw_loss_ref(logits, target, num_classes=10):
    onehot = jax.nn.one_hot(target, num_classes, dtype=jnp.float32)
    real = jnp.sum(onehot * logits, axis=1)
    other = jnp.max((1.0 - onehot) * logits - onehot * 10000.0, axis=1)
    return -jnp.sum(jnp.maximum(real - other + 50.0, 0.0))


if __name__ == "__main__":
    num_classes = 10
    key = jax.random.PRNGKey(0)
    k1, k2, k3, k4 = jax.random.split(key, 4)

    # Small shape implied by the module (B=8, C=10): single tile, lane masking.
    logits_a = jax.random.normal(k1, (8, num_classes), dtype=jnp.float32) * 5.0
    target_a = jax.random.randint(k2, (8,), 0, num_classes, dtype=jnp.int32)
    got_a = jax.block_until_ready(cw_loss(logits_a, target_a, num_classes))
    ref_a = cw_loss_ref(logits_a, target_a, num_classes)
    assert jnp.allclose(got_a, ref_a, atol=1e-4, rtol=1e-5), (got_a, ref_a)

    # Multi-tile / ragged-tail path: B=300 with 128-wide tiles, "parallel" grid,
    # per-tile partials summed outside the kernel.
    logits_b = jax.random.normal(k3, (300, num_classes), dtype=jnp.float32) * 5.0
    target_b = jax.random.randint(k4, (300,), 0, num_classes, dtype=jnp.int32)
    got_b = jax.block_until_ready(cw_loss(logits_b, target_b, num_classes, tile_b=128))
    ref_b = cw_loss_ref(logits_b, target_b, num_classes)
    assert jnp.allclose(got_b, ref_b, atol=1e-3, rtol=1e-5), (got_b, ref_b)

    print("KERNEL_OK")
</pallas_src>

<mosaic_0001>
module attributes {stable_mosaic.version = 11 : i64} {
  func.func @_cw_partial_kernel(%arg0: i32, %arg1: memref<10x128xf32, #tpu.memory_space<vmem>>, %arg2: memref<1x128xi32, #tpu.memory_space<vmem>>, %arg3: memref<1x128xf32, #tpu.memory_space<vmem>>) attributes {dimension_semantics = [#tpu.dimension_semantics<parallel>], iteration_bounds = array<i64: 1>, scalar_prefetch = 0 : i64, scratch_operands = 0 : i64, tpu.core_type = #tpu.core_type<tc>, window_params = [{transform_indices = @transform_0, window_bounds = array<i64: 10, 128>}, {transform_indices = @transform_1, window_bounds = array<i64: 1, 128>}, {transform_indices = @transform_2, window_bounds = array<i64: 1, 128>}]} {
    %c0 = arith.constant 0 : index
    %c0_0 = arith.constant 0 : index
    %0 = vector.load %arg1[%c0, %c0_0] : memref<10x128xf32, #tpu.memory_space<vmem>>, vector<10x128xf32>
    %c0_1 = arith.constant 0 : index
    %c0_2 = arith.constant 0 : index
    %1 = vector.load %arg2[%c0_1, %c0_2] : memref<1x128xi32, #tpu.memory_space<vmem>>, vector<1x128xi32>
    %2 = tpu.iota {dimensions = array<i32: 0>} : vector<10x1xi32>
    %3 = vector.broadcast %2 : vector<10x1xi32> to vector<10x128xi32>
    %4 = vector.broadcast %1 : vector<1x128xi32> to vector<10x128xi32>
    %5 = arith.cmpi eq, %3, %4 : vector<10x128xi32>
    %cst = arith.constant 0.000000e+00 : f32
    %6 = vector.broadcast %cst : f32 to vector<10x128xf32>
    %7 = arith.select %5, %0, %6 : vector<10x128xi1>, vector<10x128xf32>
    %cst_3 = arith.constant dense<0.000000e+00> : vector<128xf32>
    %8 = vector.multi_reduction <add>, %7, %cst_3 [0] : vector<10x128xf32> to vector<128xf32>
    %9 = vector.shape_cast %8 : vector<128xf32> to vector<1x128xf32>
    %cst_4 = arith.constant -1.000000e+04 : f32
    %10 = vector.broadcast %cst_4 : f32 to vector<10x128xf32>
    %11 = arith.select %5, %10, %0 : vector<10x128xi1>, vector<10x128xf32>
    %cst_5 = arith.constant dense<0xFF800000> : vector<128xf32>
    %12 = vector.multi_reduction <maximumf>, %11, %cst_5 [0] : vector<10x128xf32> to vector<128xf32>
    %13 = vector.shape_cast %12 : vector<128xf32> to vector<1x128xf32>
    %14 = arith.subf %9, %13 : vector<1x128xf32>
    %cst_6 = arith.constant 5.000000e+01 : f32
    %15 = vector.broadcast %cst_6 : f32 to vector<1x128xf32>
    %16 = arith.addf %14, %15 : vector<1x128xf32>
    %cst_7 = arith.constant 0.000000e+00 : f32
    %17 = vector.broadcast %cst_7 : f32 to vector<1x128xf32>
    %18 = arith.maximumf %16, %17 : vector<1x128xf32>
    %c128_i32 = arith.constant 128 : i32
    %19 = arith.muli %arg0, %c128_i32 : i32
    %20 = tpu.iota {dimensions = array<i32: 1>} : vector<1x128xi32>
    %21 = vector.broadcast %19 : i32 to vector<1x128xi32>
    %22 = arith.addi %21, %20 : vector<1x128xi32>
    %c8_i32 = arith.constant 8 : i32
    %23 = vector.broadcast %c8_i32 : i32 to vector<1x128xi32>
    %24 = arith.cmpi slt, %22, %23 : vector<1x128xi32>
    %cst_8 = arith.constant 0.000000e+00 : f32
    %25 = vector.broadcast %cst_8 : f32 to vector<1x128xf32>
    %26 = arith.select %24, %18, %25 : vector<1x128xi1>, vector<1x128xf32>
    %27 = vector.shape_cast %26 : vector<1x128xf32> to vector<1x1x128xf32>
    %cst_9 = arith.constant dense<0.000000e+00> : vector<1xf32>
    %28 = vector.multi_reduction <add>, %27, %cst_9 [1, 2] : vector<1x1x128xf32> to vector<1xf32>
    %29 = vector.shape_cast %28 : vector<1xf32> to vector<1x1x1xf32>
    %30 = vector.extract %29[0, 0, 0] : f32 from vector<1x1x1xf32>
    %31 = tpu.iota {dimensions = array<i32: 1>} : vector<1x128xi32>
    %c0_i32 = arith.constant 0 : i32
    %32 = vector.broadcast %c0_i32 : i32 to vector<1x128xi32>
    %33 = arith.cmpi eq, %31, %32 : vector<1x128xi32>
    %cst_10 = arith.constant 0.000000e+00 : f32
    %34 = vector.broadcast %30 : f32 to vector<1x128xf32>
    %35 = vector.broadcast %cst_10 : f32 to vector<1x128xf32>
    %36 = arith.select %33, %34, %35 : vector<1x128xi1>, vector<1x128xf32>
    %c0_11 = arith.constant 0 : index
    %c0_12 = arith.constant 0 : index
    %37 = vector.load %arg3[%c0_11, %c0_12] : memref<1x128xf32, #tpu.memory_space<vmem>>, vector<1x128xf32>
    tpu.vector_store %arg3[%c0_11, %c0_12], %36 {strides = array<i32>} : memref<1x128xf32, #tpu.memory_space<vmem>>, vector<1x128xf32>,
    return
  }
  func.func @transform_0(%arg0: i32) -> (i32, i32) {
    %c0_i32 = arith.constant 0 : i32
    %c0_i32_0 = arith.constant 0 : i32
    return %c0_i32, %arg0 : i32, i32
  }
  func.func @transform_1(%arg0: i32) -> (i32, i32) {
    %c0_i32 = arith.constant 0 : i32
    %c0_i32_0 = arith.constant 0 : i32
    return %c0_i32, %arg0 : i32, i32
  }
  func.func @transform_2(%arg0: i32) -> (i32, i32) {
    %c0_i32 = arith.constant 0 : i32
    %c0_i32_0 = arith.constant 0 : i32
    return %c0_i32, %arg0 : i32, i32
  }
}

</mosaic_0001>

<llo_original>
// kernel: tpu_custom_call.1
$region0: #{tpu_custom_call.1}
  #allocation0 [shape = 'u32[]', space=smem, size = 0x4, offset = 0x4, fixed_abs, tag = 'smem constant byte address 0x4 - core index']
  #allocation1 [shape = 'u32[144,128]{1,0:T(1,128)}', space=vmem, size = 0x12000, scoped, tag = 'internal scratch']
  %s0 = inlined_call_operand.vmem [shape: f32[10,8], index: 0, kind: input, shape index: {}]
  %s1 = inlined_call_operand.vmem [shape: s32[1,8], index: 1, kind: input, shape index: {}]
  %s2 = inlined_call_operand.hbm [shape: f32[1,128], index: 2, kind: output, shape index: {}]
  %s3 = sld [smem:[#allocation0]]
  $region18: #{tpu_custom_call.1} parent=0
    _
  %s5 = ssub.s32 1, %s3
  %s6 = scalar_select 0, %s5, %s3
  $region1: #{tpu_custom_call.1} parent=0
    #allocation2 [shape = 'u8[512]{0}', space=vmem, size = 0x400, scoped, tag = 'output window, operand 0, single buffered']
    #allocation3 [shape = 's32[1]{0}', space=sflag, size = 0x4, scoped, tag = 'scoped memory for tpu_custom_call.1']
    %7 = vsyncpa [#allocation3], 0
    // Predicated region
    $region2: #{tpu_custom_call.1} parent=1 // pred_check
      _
    $region3: #{tpu_custom_call.1} parent=1 // pred_check_branch
      %9 = sbr.rel (0) target = $region5
    $region4: #{tpu_custom_call.1} parent=1 // pred_region
      _
    $region5: #{tpu_custom_call.1} parent=1 // pred_fallthru
      _
    // Predicated region
    $region6: #{tpu_custom_call.1} parent=1 // pred_check
      _
    $region7: #{tpu_custom_call.1} parent=1 // pred_check_branch
      %11 = sbr.rel (0) target = $region9
    $region8: #{tpu_custom_call.1} parent=1 // pred_region
      _
    $region9: #{tpu_custom_call.1} parent=1 // pred_fallthru
      _
    %v12 = vld [vmem:[%s0] sm:$0xff]
    %v13 = vld [vmem:[%s0 + $0x8] sm:$0x3]
    %v14 = vld [vmem:[%s1] sm:$0x1]
    %v15 = vlaneseq
    %v16 = vshrl.u32 %v15, 7
    %v17 = vadd.s32 %v16, 8
    %v18 = vlaneseq
    %v19 = vshrl.u32 %v18, 7
    %v20 = vsub.s32 0, %v19
    %v21 = vrot.slane %v14, %v20
    %vm22 = vcmp.eq.s32.totalorder %v16, %v21
    %vm23 = vcmp.eq.s32.totalorder %v17, %v21
    %v24 = vsel %vm22, %v12, 0.0
    %v25 = vsel %vm23, %v13, 0.0
    %vm26 = vcmask 1041408
    %v27 = vsel %vm26, %v25, 0.0
    %v28 = vadd.f32 %v24, %v27
    %v29 = vrot.slane %v28, 4
    %v30 = vadd.f32 %v28, %v29
    %v31 = vrot.slane %v30, 2
    %v32 = vadd.f32 %v30, %v31
    %v33 = vrot.slane %v32, 1
    %v34 = vadd.f32 %v32, %v33
    %v35 = vsel %vm22, -10000.0, %v12
    %v36 = vsel %vm23, -10000.0, %v13
    %v37 = vsel %vm26, %v36, -inf
    %v38 = vmax.f32 %v35, %v37
    %v39 = vrot.slane %v38, 4
    %v40 = vmax.f32 %v38, %v39
    %v41 = vrot.slane %v40, 2
    %v42 = vmax.f32 %v40, %v41
    %v43 = vrot.slane %v42, 1
    %v44 = vmax.f32 %v42, %v43
    %v45 = vsub.f32 %v34, %v44
    %v46 = vadd.f32 %v45, 50.0
    %v47 = vmax.f32 %v46, 0.0
    %s48 = smul.u32 0, 128
    %v49 = vlaneseq
    %v50 = vand.u32 %v49, 127
    %v51 = vstv %s48
    %v52 = vadd.s32 %v51, %v50
    %vm53 = vcmp.lt.s32.totalorder %v52, 8
    %v54 = vsel %vm53, %v47, 0.0
    %vm55 = vcmask 1040384
    %v56 = vsel %vm55, %v54, 0.0
    %57 = vadd.xlane.f32.xlu0 %v56
    %v58 = vpop.xlane.xlu0 %57
    %v59 = vrot.slane %v58, 4
    %v60 = vadd.f32 %v58, %v59
    %v61 = vrot.slane %v60, 2
    %v62 = vadd.f32 %v60, %v61
    %v63 = vrot.slane %v62, 1
    %v64 = vadd.f32 %v62, %v63
    %s65 = vtos %v64
    %vm66 = vcmp.eq.s32.totalorder %v50, 0
    %v67 = vstv %s65
    %v68 = vsel %vm66, %v67, 0.0
    %69 = vst [vmem:[#allocation2] sm:$0x1] %v68
    // Predicated region
    $region10: #{tpu_custom_call.1} parent=1 // pred_check
      _
    $region11: #{tpu_custom_call.1} parent=1 // pred_check_branch
      %71 = sbr.rel (0) target = $region13
    $region12: #{tpu_custom_call.1} parent=1 // pred_region
      %s73 = ssub.s32 16, 16
      %74 = vsyncadd [#allocation3], %s73
      %s76 = sshll.u32 [#allocation2], 4
      %s77 = int_to_ptr.vmem [resolvable:$true] %s76
      %79 = dma.vmem_to_hbm [thread:$0]  %s77, 16, %s2, [#allocation3]
    $region13: #{tpu_custom_call.1} parent=1 // pred_fallthru
      _
    // Predicated region
    $region14: #{tpu_custom_call.1} parent=1 // pred_check
      _
    $region15: #{tpu_custom_call.1} parent=1 // pred_check_branch
      %81 = sbr.rel (0) target = $region17
    $region16: #{tpu_custom_call.1} parent=1 // pred_region
      %82 = dma.done [#allocation3], 16
    $region17: #{tpu_custom_call.1} parent=1 // pred_fallthru
      _
    %83 = vsyncpa [#allocation3], 1

</llo_original>
